<compile_context>
chip_gen: v7x
topology: tpu7x:2x2x1
jax: 0.10.0
libtpu: 0.0.40
codegen_flags: <defaults>
</compile_context>

<pallas_src>
import functools

import jax
import jax.numpy as jnp
from jax import lax
from jax.experimental import pallas as pl
from jax.experimental.pallas import tpu as pltpu


def se_block_kernel(x_ref, f1_ref, f2_ref, o_ref, *, inv_hw):
    # x_ref:  (TB, C, HWp) tile of activations for TB batch elements
    # f1_ref: (C//r, C)  -- PyTorch fc1.weight, untransposed
    # f2_ref: (C, C//r)  -- PyTorch fc2.weight, untransposed
    x = x_ref[...]                                              # (TB, C, HWp)

    # Squeeze: global average pool over the spatial (lane) dim.  Padded lanes
    # are zero, so the sum is exact; divide by the true HW.  Accumulate in
    # f32 regardless of the streaming dtype.
    pooled = jnp.sum(x.astype(jnp.float32), axis=-1) * inv_hw   # (TB, C)

    # Excitation: pooled @ fc1.T -> ReLU -> @ fc2.T -> sigmoid.
    # Contracting rhs dim 1 == trans_b matmul on the MXU (no transposes).
    h = lax.dot_general(pooled, f1_ref[...],
                        (((1,), (1,)), ((), ())),
                        preferred_element_type=jnp.float32)     # (TB, C//r)
    h = jnp.maximum(h, 0.0)
    s = lax.dot_general(h, f2_ref[...],
                        (((1,), (1,)), ((), ())),
                        preferred_element_type=jnp.float32)     # (TB, C)
    s = jax.nn.sigmoid(s)                                       # EUP exp+recip

    # Scale: per-(batch, channel) gate broadcast over the lane (spatial) dim.
    gate = s.astype(x.dtype)
    o_ref[...] = (x * gate[:, :, None]).astype(o_ref.dtype)


def _largest_divisor_leq(n, cap):
    cap = max(1, min(n, cap))
    for d in range(cap, 0, -1):
        if n % d == 0:
            return d
    return 1


def se_block(x_nchw, fc1_w, fc2_w, *, tile_budget_bytes=16 * 1024 * 1024):
    """SE block forward.

    x_nchw: (B, C, H, W); fc1_w: (C//r, C); fc2_w: (C, C//r)  (PyTorch Linear
    weights, no bias).  Matches SE_Block.forward semantics.
    """
    B, C, H, W = x_nchw.shape
    Cr = fc1_w.shape[0]
    HW = H * W
    HWp = ((HW + 127) // 128) * 128          # lane-dense last dim

    x = x_nchw.reshape(B, C, HW)             # contiguous reshape, no copy
    if HWp != HW:
        # Zero-pad the spatial dim so stores are unmasked vst; zeros don't
        # perturb the pooled sum (we divide by the true HW) and the pad is
        # sliced off afterwards.
        x = jnp.pad(x, ((0, 0), (0, 0), (0, HWp - HW)))

    # Batch-tile sizing: double-buffered input + output ~= 4 * tile bytes.
    per_batch_bytes = C * HWp * x.dtype.itemsize
    tb_cap = max(1, tile_budget_bytes // (4 * per_batch_bytes))
    # Prefer >=2 grid steps (megacore sharding on the parallel batch axis)
    # once each half still moves a decent amount of data.
    if B > 1 and (B // 2) * per_batch_bytes >= (1 << 20):
        tb_cap = min(tb_cap, max(1, B // 2))
    TB = _largest_divisor_leq(B, tb_cap)
    grid = (B // TB,)
    # TODO(synk): if a single batch element (C * HWp) ever exceeds the VMEM
    # budget, fall back to a two-pass (pool, then scale) spatially-tiled
    # kernel; typical SE-block shapes never hit that.

    kernel = functools.partial(se_block_kernel, inv_hw=1.0 / HW)
    out = pl.pallas_call(
        kernel,
        out_shape=jax.ShapeDtypeStruct((B, C, HWp), x.dtype),
        grid_spec=pltpu.PrefetchScalarGridSpec(
            num_scalar_prefetch=0,
            grid=grid,
            in_specs=[
                pl.BlockSpec((TB, C, HWp), lambda b: (b, 0, 0)),
                pl.BlockSpec((Cr, C), lambda b: (0, 0)),   # fetched once
                pl.BlockSpec((C, Cr), lambda b: (0, 0)),   # fetched once
            ],
            out_specs=pl.BlockSpec((TB, C, HWp), lambda b: (b, 0, 0)),
        ),
        compiler_params=pltpu.CompilerParams(
            dimension_semantics=("parallel",),
            vmem_limit_bytes=32 * 1024 * 1024,   # safe on v5e/v6e/v7x
        ),
    )(x, fc1_w, fc2_w)

    if HWp != HW:
        out = out[..., :HW]
    return out.reshape(B, C, H, W)


def se_block_reference(x, fc1_w, fc2_w):
    pooled = jnp.mean(x, axis=(2, 3))                       # (B, C)
    h = jnp.maximum(pooled @ fc1_w.T, 0.0)                  # (B, C//r)
    s = jax.nn.sigmoid(h @ fc2_w.T)                         # (B, C)
    return x * s[:, :, None, None]


if __name__ == "__main__":
    # Small shapes consistent with the module: B=2, C=8, ratio=2, H=W=16.
    B, C, H, W = 2, 8, 16, 16
    ratio = 2
    Cr = C // ratio

    key = jax.random.PRNGKey(0)
    kx, k1, k2 = jax.random.split(key, 3)

    x = jax.random.normal(kx, (B, C, H, W), dtype=jnp.float32)
    # PyTorch Linear default init bound 1/sqrt(fan_in).
    fc1_w = jax.random.uniform(k1, (Cr, C), jnp.float32,
                               minval=-1.0 / jnp.sqrt(C), maxval=1.0 / jnp.sqrt(C))
    fc2_w = jax.random.uniform(k2, (C, Cr), jnp.float32,
                               minval=-1.0 / jnp.sqrt(Cr), maxval=1.0 / jnp.sqrt(Cr))

    out = se_block(x, fc1_w, fc2_w)
    out = jax.block_until_ready(out)

    ref = se_block_reference(x, fc1_w, fc2_w)
    assert out.shape == (B, C, H, W)
    assert jnp.allclose(out, ref, atol=1e-5, rtol=1e-5), "mismatch vs JAX reference"

    print("KERNEL_OK")
</pallas_src>

<mosaic_0001>
module attributes {stable_mosaic.version = 11 : i64} {
  func.func @se_block_kernel(%arg0: i32, %arg1: memref<2x8x256xf32, #tpu.memory_space<vmem>>, %arg2: memref<4x8xf32, #tpu.memory_space<vmem>>, %arg3: memref<8x4xf32, #tpu.memory_space<vmem>>, %arg4: memref<2x8x256xf32, #tpu.memory_space<vmem>>) attributes {dimension_semantics = [#tpu.dimension_semantics<parallel>], iteration_bounds = array<i64: 1>, scalar_prefetch = 0 : i64, scratch_operands = 0 : i64, tpu.core_type = #tpu.core_type<tc>, window_params = [{transform_indices = @transform_0, window_bounds = array<i64: 2, 8, 256>}, {pipeline_mode = #tpu.pipeline_mode<synchronous>, transform_indices = @transform_1, window_bounds = array<i64: 4, 8>}, {pipeline_mode = #tpu.pipeline_mode<synchronous>, transform_indices = @transform_2, window_bounds = array<i64: 8, 4>}, {transform_indices = @transform_3, window_bounds = array<i64: 2, 8, 256>}]} {
    %c0 = arith.constant 0 : index
    %c0_0 = arith.constant 0 : index
    %c0_1 = arith.constant 0 : index
    %0 = vector.load %arg1[%c0, %c0_0, %c0_1] : memref<2x8x256xf32, #tpu.memory_space<vmem>>, vector<2x8x256xf32>
    %cst = arith.constant dense<0.000000e+00> : vector<2x8xf32>
    %1 = vector.multi_reduction <add>, %0, %cst [2] : vector<2x8x256xf32> to vector<2x8xf32>
    %cst_2 = arith.constant 3.906250e-03 : f32
    %2 = vector.broadcast %cst_2 : f32 to vector<2x8xf32>
    %3 = arith.mulf %1, %2 : vector<2x8xf32>
    %c0_3 = arith.constant 0 : index
    %c0_4 = arith.constant 0 : index
    %4 = vector.load %arg2[%c0_3, %c0_4] : memref<4x8xf32, #tpu.memory_space<vmem>>, vector<4x8xf32>
    %cst_5 = arith.constant dense<0.000000e+00> : vector<2x4xf32>
    %5 = tpu.matmul %3, %4, %cst_5 {dimension_numbers = #tpu.dot_dimension_numbers<[1], [1], [0], [0], [0, 0, 1, 0], [], []>} : vector<2x8xf32>, vector<4x8xf32>, vector<2x4xf32> -> vector<2x4xf32>
    %cst_6 = arith.constant 0.000000e+00 : f32
    %6 = vector.broadcast %cst_6 : f32 to vector<2x4xf32>
    %7 = arith.maximumf %5, %6 : vector<2x4xf32>
    %c0_7 = arith.constant 0 : index
    %c0_8 = arith.constant 0 : index
    %8 = vector.load %arg3[%c0_7, %c0_8] : memref<8x4xf32, #tpu.memory_space<vmem>>, vector<8x4xf32>
    %cst_9 = arith.constant dense<0.000000e+00> : vector<2x8xf32>
    %9 = tpu.matmul %7, %8, %cst_9 {dimension_numbers = #tpu.dot_dimension_numbers<[1], [1], [0], [0], [0, 0, 1, 0], [], []>} : vector<2x4xf32>, vector<8x4xf32>, vector<2x8xf32> -> vector<2x8xf32>
    %10 = arith.negf %9 : vector<2x8xf32>
    %11 = math.exp %10 : vector<2x8xf32>
    %cst_10 = arith.constant 1.000000e+00 : f32
    %12 = vector.broadcast %cst_10 : f32 to vector<2x8xf32>
    %13 = arith.addf %12, %11 : vector<2x8xf32>
    %14 = arith.divf %12, %13 : vector<2x8xf32>
    %15 = vector.shape_cast %14 : vector<2x8xf32> to vector<2x8x1xf32>
    %16 = vector.broadcast %15 : vector<2x8x1xf32> to vector<2x8x256xf32>
    %17 = arith.mulf %0, %16 : vector<2x8x256xf32>
    %c0_11 = arith.constant 0 : index
    %c0_12 = arith.constant 0 : index
    %c0_13 = arith.constant 0 : index
    %18 = vector.load %arg4[%c0_11, %c0_12, %c0_13] : memref<2x8x256xf32, #tpu.memory_space<vmem>>, vector<2x8x256xf32>
    tpu.vector_store %arg4[%c0_11, %c0_12, %c0_13], %17 {strides = array<i32>} : memref<2x8x256xf32, #tpu.memory_space<vmem>>, vector<2x8x256xf32>,
    return
  }
  func.func @transform_0(%arg0: i32) -> (i32, i32, i32) {
    %c0_i32 = arith.constant 0 : i32
    %c0_i32_0 = arith.constant 0 : i32
    %c0_i32_1 = arith.constant 0 : i32
    return %arg0, %c0_i32, %c0_i32_0 : i32, i32, i32
  }
  func.func @transform_1(%arg0: i32) -> (i32, i32) {
    %c0_i32 = arith.constant 0 : i32
    %c0_i32_0 = arith.constant 0 : i32
    %c0_i32_1 = arith.constant 0 : i32
    return %c0_i32, %c0_i32_0 : i32, i32
  }
  func.func @transform_2(%arg0: i32) -> (i32, i32) {
    %c0_i32 = arith.constant 0 : i32
    %c0_i32_0 = arith.constant 0 : i32
    %c0_i32_1 = arith.constant 0 : i32
    return %c0_i32, %c0_i32_0 : i32, i32
  }
  func.func @transform_3(%arg0: i32) -> (i32, i32, i32) {
    %c0_i32 = arith.constant 0 : i32
    %c0_i32_0 = arith.constant 0 : i32
    %c0_i32_1 = arith.constant 0 : i32
    return %arg0, %c0_i32, %c0_i32_0 : i32, i32, i32
  }
}

</mosaic_0001>

<llo_original>
// kernel: tpu_custom_call.1
$region0: #{tpu_custom_call.1}
  #allocation0 [shape = 'u32[]', space=smem, size = 0x4, offset = 0x4, fixed_abs, tag = 'smem constant byte address 0x4 - core index']
  #allocation1 [shape = 'u32[144,128]{1,0:T(1,128)}', space=vmem, size = 0x12000, scoped, tag = 'internal scratch']
  %s0 = inlined_call_operand.hbm [shape: f32[2,8,256], index: 0, kind: input, shape index: {}]
  %s1 = inlined_call_operand.vmem [shape: f32[4,8], index: 1, kind: input, shape index: {}]
  %s2 = inlined_call_operand.vmem [shape: f32[8,4], index: 2, kind: input, shape index: {}]
  %s3 = inlined_call_operand.hbm [shape: f32[2,8,256], index: 3, kind: output, shape index: {}]
  %s4 = sld [smem:[#allocation0]]
  $region26: #{tpu_custom_call.1} parent=0
    _
  %s6 = ssub.s32 1, %s4
  %s7 = scalar_select 0, %s6, %s4
  $region1: #{tpu_custom_call.1} parent=0
    #allocation2 [shape = 'u8[16384]{0}', space=vmem, size = 0x4000, scoped, tag = 'input window, operand 0, single buffered']
    #allocation3 [shape = 's32[1]{0}', space=sflag, size = 0x4, scoped, tag = 'scoped memory for tpu_custom_call.1']
    #allocation4 [shape = 's32[1]{0}', space=sflag, size = 0x4, scoped, tag = 'scoped memory for tpu_custom_call.1']
    #allocation5 [shape = 'u8[16384]{0}', space=vmem, size = 0x4000, scoped, tag = 'output window, operand 0, single buffered']
    %8 = vsyncpa [#allocation3], 0
    %9 = vsyncpa [#allocation4], 0
    // Predicated region
    $region2: #{tpu_custom_call.1} parent=1 // pred_check
      _
    $region3: #{tpu_custom_call.1} parent=1 // pred_check_branch
      %11 = sbr.rel (0) target = $region5
    $region4: #{tpu_custom_call.1} parent=1 // pred_region
      %s13 = ssub.s32 512, 512
      %14 = vsyncadd [#allocation3], %s13
      %s15 = sshll.u32 [#allocation2], 4
      %s16 = int_to_ptr.vmem [resolvable:$true] %s15
      %21 = dma.hbm_to_vmem [thread:$0]  %s0, 512, %s16, [#allocation3], 256, 256, 16
    $region5: #{tpu_custom_call.1} parent=1 // pred_fallthru
      _
    // Predicated region
    $region6: #{tpu_custom_call.1} parent=1 // pred_check
      _
    $region7: #{tpu_custom_call.1} parent=1 // pred_check_branch
      %23 = sbr.rel (0) target = $region9
    $region8: #{tpu_custom_call.1} parent=1 // pred_region
      _
    $region9: #{tpu_custom_call.1} parent=1 // pred_fallthru
      _
    // Predicated region
    $region10: #{tpu_custom_call.1} parent=1 // pred_check
      _
    $region11: #{tpu_custom_call.1} parent=1 // pred_check_branch
      %25 = sbr.rel (0) target = $region13
    $region12: #{tpu_custom_call.1} parent=1 // pred_region
      _
    $region13: #{tpu_custom_call.1} parent=1 // pred_fallthru
      _
    // Predicated region
    $region14: #{tpu_custom_call.1} parent=1 // pred_check
      _
    $region15: #{tpu_custom_call.1} parent=1 // pred_check_branch
      %27 = sbr.rel (0) target = $region17
    $region16: #{tpu_custom_call.1} parent=1 // pred_region
      %28 = dma.done [#allocation3], 512
    $region17: #{tpu_custom_call.1} parent=1 // pred_fallthru
      _
    %v29 = vld [vmem:[#allocation2] sm:$0xff]
    %v30 = vld [vmem:[#allocation2 + $0x8] sm:$0xff]
    %v31 = vld [vmem:[#allocation2 + $0x10] sm:$0xff]
    %v32 = vld [vmem:[#allocation2 + $0x18] sm:$0xff]
    %v33 = vadd.f32 %v29, %v30
    %34 = vadd.xlane.f32.xlu0 %v33
    %v35 = vpop.xlane.xlu0 %34
    %v36 = vadd.f32 %v31, %v32
    %37 = vadd.xlane.f32.xlu0 %v36
    %v38 = vpop.xlane.xlu0 %37
    %v39 = vmul.f32 %v35, 0.00390625
    %v40 = vmul.f32 %v38, 0.00390625
    %v41 = vld [vmem:[%s1] sm:$0xf]
    %v44 = vlaneseq
    %v45 = vand.u32 %v44, 127
    %v46 = vlaneseq
    %v47 = vshrl.u32 %v46, 7
    %v48 = vsub.s32 %v45, %v47
    %v49 = vrot.slane %v39, %v48
    %v50 = vlaneseq
    %v51 = vshrl.u32 %v50, 7
    %v52 = vsub.s32 %v45, %v51
    %v53 = vrot.slane %v40, %v52
    %vm54 = vcmask 1041409
    %v55 = vsel %vm54, %v53, %v49
    %vm56 = vcmask 64512
    %v57 = vsel %vm56, %v55, 0
    %v60 = vsel %vm56, %v41, 0
    %62 = vmatprep.subr.mxu0 0.0
    %63 = vmatpush1.xpose.msra.mxu0 %v60
    %64 = vmatprep.subr.mxu0 0.0
    %65 = vmatpush1.xpose.msra.mxu0 0.0
    %66 = vmatprep.subr.mxu0 0.0
    %67 = vmatpush1.xpose.msra.mxu0 0.0
    %68 = vmatprep.subr.mxu0 0.0
    %69 = vmatpush1.xpose.msra.mxu0 0.0
    %70 = vmatprep.subr.mxu0 0.0
    %71 = vmatpush1.xpose.msra.mxu0 0.0
    %72 = vmatprep.subr.mxu0 0.0
    %73 = vmatpush1.xpose.msra.mxu0 0.0
    %74 = vmatprep.subr.mxu0 0.0
    %75 = vmatpush1.xpose.msra.mxu0 0.0
    %76 = vmatprep.subr.mxu0 0.0
    %77 = vmatpush1.xpose.msra.mxu0 0.0
    %78 = vmatprep.subr.mxu0 0.0
    %79 = vmatpush1.xpose.msra.mxu0 0.0
    %80 = vmatprep.subr.mxu0 0.0
    %81 = vmatpush1.xpose.msra.mxu0 0.0
    %82 = vmatprep.subr.mxu0 0.0
    %83 = vmatpush1.xpose.msra.mxu0 0.0
    %84 = vmatprep.subr.mxu0 0.0
    %85 = vmatpush1.xpose.msra.mxu0 0.0
    %86 = vmatprep.subr.mxu0 0.0
    %87 = vmatpush1.xpose.msra.mxu0 0.0
    %88 = vmatprep.subr.mxu0 0.0
    %89 = vmatpush1.xpose.msra.mxu0 0.0
    %90 = vmatprep.subr.mxu0 0.0
    %91 = vmatpush1.xpose.msra.mxu0 0.0
    %92 = vmatprep.subr.mxu0 0.0
    %93 = vmatpush1.xpose.msra.mxu0 0.0
    %94 = vmatprep.subr.mxu0 0.0
    %95 = vmatpush1.xpose.msra.mxu0 0.0
    %96 = vmatprep.subr.mxu0 0.0
    %97 = vmatpush1.xpose.msra.mxu0 0.0
    %98 = vmatprep.subr.mxu0 0.0
    %99 = vmatpush1.xpose.msra.mxu0 0.0
    %100 = vmatprep.subr.mxu0 0.0
    %101 = vmatpush1.xpose.msra.mxu0 0.0
    %102 = vmatprep.subr.mxu0 0.0
    %103 = vmatpush1.xpose.msra.mxu0 0.0
    %104 = vmatprep.subr.mxu0 0.0
    %105 = vmatpush1.xpose.msra.mxu0 0.0
    %106 = vmatprep.subr.mxu0 0.0
    %107 = vmatpush1.xpose.msra.mxu0 0.0
    %108 = vmatprep.subr.mxu0 0.0
    %109 = vmatpush1.xpose.msra.mxu0 0.0
    %110 = vmatprep.subr.mxu0 0.0
    %111 = vmatpush1.xpose.msra.mxu0 0.0
    %112 = vmatprep.subr.mxu0 0.0
    %113 = vmatpush1.xpose.msra.mxu0 0.0
    %114 = vmatprep.subr.mxu0 0.0
    %115 = vmatpush1.xpose.msra.mxu0 0.0
    %116 = vmatprep.subr.mxu0 0.0
    %117 = vmatpush1.xpose.msra.mxu0 0.0
    %118 = vmatprep.subr.mxu0 0.0
    %119 = vmatpush1.xpose.msra.mxu0 0.0
    %120 = vmatprep.subr.mxu0 0.0
    %121 = vmatpush1.xpose.msra.mxu0 0.0
    %122 = vmatprep.subr.mxu0 0.0
    %123 = vmatpush1.xpose.msra.mxu0 0.0
    %124 = vmatprep.subr.mxu0 0.0
    %125 = vmatpush1.xpose.msra.mxu0 0.0
    %126 = vmatprep.mubr.f32.mxu0 0.0
    %127 = vmatmul.mubr.f32.gmra.mrb[0].mxu0 %v57
    %v128 = vpop.f32.mrb[0].mxu0
    %v129 = vadd.f32 0.0, %v128
    %v130 = vpop.f32.mrb[0].mxu0
    %131 = vdwg.mxu0
    %v132 = vmax.f32 %v129, 0.0
    %v133 = vld [vmem:[%s2] sm:$0xff]
    %vm134 = vcmask 31744
    %v136 = vsel %vm134, %v132, 0
    %v139 = vsel %vm134, %v133, 0
    %141 = vmatprep.subr.mxu0 0.0
    %142 = vmatpush1.xpose.msra.mxu0 %v139
    %143 = vmatprep.subr.mxu0 0.0
    %144 = vmatpush1.xpose.msra.mxu0 0.0
    %145 = vmatprep.subr.mxu0 0.0
    %146 = vmatpush1.xpose.msra.mxu0 0.0
    %147 = vmatprep.subr.mxu0 0.0
    %148 = vmatpush1.xpose.msra.mxu0 0.0
    %149 = vmatprep.subr.mxu0 0.0
    %150 = vmatpush1.xpose.msra.mxu0 0.0
    %151 = vmatprep.subr.mxu0 0.0
    %152 = vmatpush1.xpose.msra.mxu0 0.0
    %153 = vmatprep.subr.mxu0 0.0
    %154 = vmatpush1.xpose.msra.mxu0 0.0
    %155 = vmatprep.subr.mxu0 0.0
    %156 = vmatpush1.xpose.msra.mxu0 0.0
    %157 = vmatprep.subr.mxu0 0.0
    %158 = vmatpush1.xpose.msra.mxu0 0.0
    %159 = vmatprep.subr.mxu0 0.0
    %160 = vmatpush1.xpose.msra.mxu0 0.0
    %161 = vmatprep.subr.mxu0 0.0
    %162 = vmatpush1.xpose.msra.mxu0 0.0
    %163 = vmatprep.subr.mxu0 0.0
    %164 = vmatpush1.xpose.msra.mxu0 0.0
    %165 = vmatprep.subr.mxu0 0.0
    %166 = vmatpush1.xpose.msra.mxu0 0.0
    %167 = vmatprep.subr.mxu0 0.0
    %168 = vmatpush1.xpose.msra.mxu0 0.0
    %169 = vmatprep.subr.mxu0 0.0
    %170 = vmatpush1.xpose.msra.mxu0 0.0
    %171 = vmatprep.subr.mxu0 0.0
    %172 = vmatpush1.xpose.msra.mxu0 0.0
    %173 = vmatprep.subr.mxu0 0.0
    %174 = vmatpush1.xpose.msra.mxu0 0.0
    %175 = vmatprep.subr.mxu0 0.0
    %176 = vmatpush1.xpose.msra.mxu0 0.0
    %177 = vmatprep.subr.mxu0 0.0
    %178 = vmatpush1.xpose.msra.mxu0 0.0
    %179 = vmatprep.subr.mxu0 0.0
    %180 = vmatpush1.xpose.msra.mxu0 0.0
    %181 = vmatprep.subr.mxu0 0.0
    %182 = vmatpush1.xpose.msra.mxu0 0.0
    %183 = vmatprep.subr.mxu0 0.0
    %184 = vmatpush1.xpose.msra.mxu0 0.0
    %185 = vmatprep.subr.mxu0 0.0
    %186 = vmatpush1.xpose.msra.mxu0 0.0
    %187 = vmatprep.subr.mxu0 0.0
    %188 = vmatpush1.xpose.msra.mxu0 0.0
    %189 = vmatprep.subr.mxu0 0.0
    %190 = vmatpush1.xpose.msra.mxu0 0.0
    %191 = vmatprep.subr.mxu0 0.0
    %192 = vmatpush1.xpose.msra.mxu0 0.0
    %193 = vmatprep.subr.mxu0 0.0
    %194 = vmatpush1.xpose.msra.mxu0 0.0
    %195 = vmatprep.subr.mxu0 0.0
    %196 = vmatpush1.xpose.msra.mxu0 0.0
    %197 = vmatprep.subr.mxu0 0.0
    %198 = vmatpush1.xpose.msra.mxu0 0.0
    %199 = vmatprep.subr.mxu0 0.0
    %200 = vmatpush1.xpose.msra.mxu0 0.0
    %201 = vmatprep.subr.mxu0 0.0
    %202 = vmatpush1.xpose.msra.mxu0 0.0
    %203 = vmatprep.subr.mxu0 0.0
    %204 = vmatpush1.xpose.msra.mxu0 0.0
    %205 = vmatprep.mubr.f32.mxu0 0.0
    %206 = vmatmul.mubr.f32.gmra.mrb[0].mxu0 %v136
    %v207 = vpop.f32.mrb[0].mxu0
    %v208 = vadd.f32 0.0, %v207
    %v209 = vpop.f32.mrb[0].mxu0
    %210 = vdwg.mxu0
    %v211 = vxor.u32 %v208, 2147483648
    %v212 = vmul.f32 %v211, 1.442695
    %v213 = vpow.pop %v212
    %v214 = vadd.f32 %v213, 1.0
    %v215 = vrcp.pop %v214
    %v216 = vmul.f32 1.0, %v215
    %v217 = vlaneseq
    %v218 = vshrl.u32 %v217, 7
    %v219 = vsub.s32 0, %v218
    %v220 = vrot.slane %v216, %v219
    %222 = vbcast.lane.b32.xlu0 %v220, 256
    %v223 = vpop.permute.xlu0 %222
    %v224 = vlaneseq
    %v225 = vshrl.u32 %v224, 7
    %v226 = vsub.s32 1, %v225
    %v227 = vrot.slane %v216, %v226
    %229 = vbcast.lane.b32.xlu0 %v227, 256
    %v230 = vpop.permute.xlu0 %229
    %v231 = vmul.f32 %v29, %v223
    %v232 = vmul.f32 %v30, %v223
    %v233 = vmul.f32 %v31, %v230
    %v234 = vmul.f32 %v32, %v230
    %235 = vst [vmem:[#allocation5] sm:$0xff] %v231
    %236 = vst [vmem:[#allocation5 + $0x8] sm:$0xff] %v232
    %237 = vst [vmem:[#allocation5 + $0x10] sm:$0xff] %v233
    %238 = vst [vmem:[#allocation5 + $0x18] sm:$0xff] %v234
    // Predicated region
    $region18: #{tpu_custom_call.1} parent=1 // pred_check
      _
    $region19: #{tpu_custom_call.1} parent=1 // pred_check_branch
      %240 = sbr.rel (0) target = $region21
    $region20: #{tpu_custom_call.1} parent=1 // pred_region
      %s242 = ssub.s32 512, 512
      %243 = vsyncadd [#allocation4], %s242
      %s244 = sshll.u32 [#allocation5], 4
      %s245 = int_to_ptr.vmem [resolvable:$true] %s244
      %250 = dma.vmem_to_hbm [thread:$0]  %s245, 512, %s3, [#allocation4], 256, 256, 16
    $region21: #{tpu_custom_call.1} parent=1 // pred_fallthru
      _
    // Predicated region
    $region22: #{tpu_custom_call.1} parent=1 // pred_check
      _
    $region23: #{tpu_custom_call.1} parent=1 // pred_check_branch
      %252 = sbr.rel (0) target = $region25
    $region24: #{tpu_custom_call.1} parent=1 // pred_region
      %253 = dma.done [#allocation4], 512
    $region25: #{tpu_custom_call.1} parent=1 // pred_fallthru
      _
    %254 = vsyncpa [#allocation3], 1
    %255 = vsyncpa [#allocation4], 1

</llo_original>
